<compile_context>
chip_gen: v5e
topology: v5e:2x2
jax: 0.10.0
libtpu: 0.0.40
codegen_flags: <defaults>
</compile_context>

<pallas_src>
import functools

import jax
import jax.numpy as jnp
from jax.experimental import pallas as pl
from jax.experimental.pallas import tpu as pltpu


def _round_up(x: int, m: int) -> int:
    return ((x + m - 1) // m) * m


def _choose_k_tiling(d_in: int, k_tile: int):
    """Pick the K (d_in) tile.  Small d_in -> one full-width block (resident Wb, no padding).
    Large d_in -> stream Wb in (tk, F) blocks; Wb rows are zero-padded to k_pad at prep time."""
    if d_in <= k_tile:
        return d_in, d_in
    tk = _round_up(k_tile, 128)
    return tk, _round_up(d_in, tk)


def _classifier_kernel(x_ref, wb_ref, bb_ref, wh_ref, bh_ref, pred_ref, feat_ref, acc_ref,
                       *, d_in, tk, mask_k, compute_dtype):
    """Fused backbone-linear + ReLU + (lane-padded) head-linear for one (batch, K) tile.

    x_ref    : (TB, TK)     input tile in its original dtype (cast in-kernel)
    wb_ref   : (TK, F)      backbone weight block (compute dtype, K-padded with zeros)
    bb_ref   : (1, F)       backbone bias (f32)
    wh_ref   : (F, C_pad)   head weight, zero-padded to 128 lanes, resident across grid
    bh_ref   : (1, C_pad)   head bias, zero-padded (f32)
    pred_ref : (TB, C_pad)  lane-dense predictions output
    feat_ref : (TB, F)      features output
    acc_ref  : (TB, F) f32  accumulator scratch across the K axis
    """
    k = pl.program_id(1)

    @pl.when(k == 0)
    def _init():
        acc_ref[...] = jnp.zeros_like(acc_ref)

    x = x_ref[...]
    if mask_k:
        # Ragged last K block: zero the columns beyond d_in so garbage never reaches the
        # accumulator (the corresponding Wb rows are already explicit zeros from prep).
        col = jax.lax.broadcasted_iota(jnp.int32, x.shape, 1) + k * tk
        x = jnp.where(col < d_in, x, jnp.zeros_like(x))
    # In-kernel cast to the MXU compute dtype (bf16 by default): VPU filler work that halves
    # x-related HBM traffic vs. casting/padding in the wrapper.
    x = x.astype(compute_dtype)

    # backbone Linear: MXU matmul with f32 accumulation.
    acc_ref[...] += jnp.dot(x, wb_ref[...], preferred_element_type=jnp.float32)

    @pl.when(k == pl.num_programs(1) - 1)
    def _finalize():
        # bias + ReLU in f32 on the VPU (v5e has no bf16 VPU); bottleneck = Identity.
        f = jnp.maximum(acc_ref[...] + bb_ref[...], 0.0)
        feat_ref[...] = f.astype(feat_ref.dtype)
        # head Linear into a lane-dense (TB, 128) slab; padded columns are zero.
        p = jnp.dot(f.astype(wh_ref.dtype), wh_ref[...], preferred_element_type=jnp.float32)
        pred_ref[...] = (p + bh_ref[...]).astype(pred_ref.dtype)


def prepare_classifier_params(wb, bb, wh, bh, *, compute_dtype=jnp.bfloat16, k_tile=2048):
    """One-time parameter prep, hoisted out of the hot forward path:
       - cast backbone/head weights to the compute dtype (bf16 by default)
       - zero-pad backbone weight rows (K) to a multiple of the K tile
       - zero-pad head weight / bias columns to a lane-dense multiple of 128
    Returns (wb_p, bb_r, wh_p, bh_p)."""
    d_in, feat_dim = wb.shape
    num_classes = wh.shape[1]
    _, k_pad = _choose_k_tiling(d_in, k_tile)
    c_pad = _round_up(max(num_classes, 1), 128)

    wb_p = jnp.zeros((k_pad, feat_dim), compute_dtype).at[:d_in, :].set(
        jnp.asarray(wb).astype(compute_dtype))
    bb_r = jnp.asarray(bb, jnp.float32).reshape(1, feat_dim)
    wh_p = jnp.zeros((feat_dim, c_pad), compute_dtype).at[:, :num_classes].set(
        jnp.asarray(wh).astype(compute_dtype))
    bh_p = jnp.zeros((1, c_pad), jnp.float32).at[:, :num_classes].set(
        jnp.asarray(bh, jnp.float32))
    return wb_p, bb_r, wh_p, bh_p


def classifier_forward(x, wb_p, bb_r, wh_p, bh_p, *, num_classes,
                       compute_dtype=jnp.bfloat16, k_tile=2048, batch_tile=512,
                       out_dtype=None):
    """Flatten the input (view only), invoke the fused Pallas kernel with batch/K tiling, and
    slice the lane padding off.  Returns (predictions, features) like Classifier.forward."""
    B = x.shape[0]
    x_flat = x.reshape(B, -1)                 # row-major flatten == torch flatten; no copy/cast
    d_in = x_flat.shape[1]
    k_pad_w, feat_dim = wb_p.shape
    c_pad = wh_p.shape[1]
    out_dtype = x.dtype if out_dtype is None else out_dtype

    tk, k_pad = _choose_k_tiling(d_in, k_tile)
    if k_pad != k_pad_w:
        raise ValueError("wb was prepared with a different k_tile / d_in than this call uses")
    num_k = k_pad // tk
    mask_k = (k_pad != d_in)

    # Batch tiling: no batch padding; Pallas handles the ragged trailing tile.
    if B <= 8:
        tb = B                                    # single block == full batch dim (tiny B)
    elif B < 2 * batch_tile:
        tb = _round_up((B + 1) // 2, 8)           # >=2 tiles so both v7x TensorCores get work
    else:
        tb = batch_tile
    num_b = pl.cdiv(B, tb)

    kernel = functools.partial(_classifier_kernel, d_in=d_in, tk=tk, mask_k=mask_k,
                               compute_dtype=compute_dtype)

    out_isz = jnp.dtype(out_dtype).itemsize
    cost = pl.CostEstimate(
        flops=2 * B * (d_in * feat_dim + feat_dim * c_pad),
        transcendentals=0,
        bytes_accessed=int(
            B * d_in * x_flat.dtype.itemsize            # x (read once, original dtype)
            + k_pad * feat_dim * wb_p.dtype.itemsize    # wb (pre-cast)
            + feat_dim * 4                              # bb
            + feat_dim * c_pad * wh_p.dtype.itemsize    # wh
            + c_pad * 4                                 # bh
            + B * c_pad * out_isz                       # predictions slab
            + B * feat_dim * out_isz                    # features
        ),
    )

    preds_p, feats = pl.pallas_call(
        kernel,
        out_shape=(
            jax.ShapeDtypeStruct((B, c_pad), out_dtype),
            jax.ShapeDtypeStruct((B, feat_dim), out_dtype),
        ),
        grid_spec=pltpu.PrefetchScalarGridSpec(
            num_scalar_prefetch=0,
            grid=(num_b, num_k),                                  # reduction (K) axis last
            in_specs=[
                pl.BlockSpec((tb, tk), lambda i, k: (i, k)),          # x tile
                pl.BlockSpec((tk, feat_dim), lambda i, k: (k, 0)),    # wb block (resident if num_k==1)
                pl.BlockSpec((1, feat_dim), lambda i, k: (0, 0)),     # bb resident
                pl.BlockSpec((feat_dim, c_pad), lambda i, k: (0, 0)), # wh resident
                pl.BlockSpec((1, c_pad), lambda i, k: (0, 0)),        # bh resident
            ],
            out_specs=[
                pl.BlockSpec((tb, c_pad), lambda i, k: (i, 0)),       # lane-dense predictions
                pl.BlockSpec((tb, feat_dim), lambda i, k: (i, 0)),    # features
            ],
            scratch_shapes=[pltpu.VMEM((tb, feat_dim), jnp.float32)], # K accumulator
        ),
        compiler_params=pltpu.CompilerParams(
            dimension_semantics=("parallel", "arbitrary"),  # megacore-shard batch; K is a reduction
            vmem_limit_bytes=48 << 20,                      # fits v7x's 64 MiB physical VMEM
        ),
        cost_estimate=cost,
    )(x_flat, wb_p, bb_r, wh_p, bh_p)

    # Slice the lane padding off to preserve the module's (B, num_classes) contract.
    return preds_p[:, :num_classes], feats


classifier_forward_jit = jax.jit(
    classifier_forward,
    static_argnames=("num_classes", "compute_dtype", "k_tile", "batch_tile", "out_dtype"),
)


def init_params(key, d_in, feat_dim, num_classes):
    """Deterministic init mimicking torch.nn.Linear (uniform +-1/sqrt(fan_in))."""
    k1, k2, k3, k4 = jax.random.split(key, 4)
    lim_b = 1.0 / jnp.sqrt(jnp.float32(d_in))
    lim_h = 1.0 / jnp.sqrt(jnp.float32(feat_dim))
    wb = jax.random.uniform(k1, (d_in, feat_dim), jnp.float32, -lim_b, lim_b)
    bb = jax.random.uniform(k2, (feat_dim,), jnp.float32, -lim_b, lim_b)
    wh = jax.random.uniform(k3, (feat_dim, num_classes), jnp.float32, -lim_h, lim_h)
    bh = jax.random.uniform(k4, (num_classes,), jnp.float32, -lim_h, lim_h)
    return wb, bb, wh, bh


if __name__ == "__main__":
    # Small shapes consistent with the module: NCHW input, 10-way classifier.
    B, C_in, H, W = 2, 4, 16, 16
    D_IN = C_in * H * W          # 1024
    FEAT_DIM = 128               # backbone.out_features == features_dim (Identity bottleneck)
    NUM_CLASSES = 10

    key = jax.random.PRNGKey(0)
    kx, kx2, kp = jax.random.split(key, 3)
    x = jax.random.normal(kx, (B, C_in, H, W), jnp.float32)
    wb, bb, wh, bh = init_params(kp, D_IN, FEAT_DIM, NUM_CLASSES)

    x_flat = x.reshape(B, D_IN)
    f_ref = jnp.maximum(x_flat @ wb + bb, 0.0)
    p_ref = f_ref @ wh + bh

    # --- 1. f32 path, single resident K block: strict parity with the PyTorch module ---
    params32 = prepare_classifier_params(wb, bb, wh, bh, compute_dtype=jnp.float32)
    preds, feats = classifier_forward_jit(x, *params32, num_classes=NUM_CLASSES,
                                          compute_dtype=jnp.float32)
    jax.block_until_ready((preds, feats))
    assert preds.shape == (B, NUM_CLASSES) and feats.shape == (B, FEAT_DIM)
    assert jnp.allclose(preds, p_ref, atol=1e-5, rtol=1e-5)
    assert jnp.allclose(feats, f_ref, atol=1e-5, rtol=1e-5)

    # --- 2. f32 path, K-tiled (2 K steps through the f32 accumulator scratch) ---
    params32k = prepare_classifier_params(wb, bb, wh, bh, compute_dtype=jnp.float32, k_tile=512)
    preds, feats = classifier_forward_jit(x, *params32k, num_classes=NUM_CLASSES,
                                          compute_dtype=jnp.float32, k_tile=512)
    jax.block_until_ready((preds, feats))
    assert jnp.allclose(preds, p_ref, atol=1e-5, rtol=1e-5)
    assert jnp.allclose(feats, f_ref, atol=1e-5, rtol=1e-5)

    # --- 3. f32 path, larger batch -> two batch tiles with a ragged trailing tile ---
    B2 = 20
    x2 = jax.random.normal(kx2, (B2, C_in, H, W), jnp.float32)
    f2_ref = jnp.maximum(x2.reshape(B2, D_IN) @ wb + bb, 0.0)
    p2_ref = f2_ref @ wh + bh
    preds2, feats2 = classifier_forward_jit(x2, *params32, num_classes=NUM_CLASSES,
                                            compute_dtype=jnp.float32)
    jax.block_until_ready((preds2, feats2))
    assert preds2.shape == (B2, NUM_CLASSES) and feats2.shape == (B2, FEAT_DIM)
    assert jnp.allclose(preds2, p2_ref, atol=1e-5, rtol=1e-5)
    assert jnp.allclose(feats2, f2_ref, atol=1e-5, rtol=1e-5)

    # --- 4. bf16 MXU path (perf default on v6e/v7x): check vs bf16-consistent reference ---
    params_bf = prepare_classifier_params(wb, bb, wh, bh, compute_dtype=jnp.bfloat16)
    preds_bf, feats_bf = classifier_forward_jit(x, *params_bf, num_classes=NUM_CLASSES,
                                                compute_dtype=jnp.bfloat16)
    jax.block_until_ready((preds_bf, feats_bf))
    xb = x_flat.astype(jnp.bfloat16)
    f_ref_bf = jnp.maximum(
        jnp.dot(xb, wb.astype(jnp.bfloat16), preferred_element_type=jnp.float32) + bb, 0.0)
    p_ref_bf = (jnp.dot(f_ref_bf.astype(jnp.bfloat16), wh.astype(jnp.bfloat16),
                        preferred_element_type=jnp.float32) + bh)
    assert preds_bf.shape == (B, NUM_CLASSES) and feats_bf.shape == (B, FEAT_DIM)
    assert jnp.allclose(feats_bf, f_ref_bf, atol=2e-2, rtol=2e-2)
    assert jnp.allclose(preds_bf, p_ref_bf, atol=2e-2, rtol=2e-2)

    print("KERNEL_OK")
</pallas_src>

<mosaic_0001>
module attributes {stable_mosaic.version = 11 : i64} {
  func.func @_classifier_kernel(%arg0: i32, %arg1: i32, %arg2: memref<2x1024xf32, #tpu.memory_space<vmem>>, %arg3: memref<1024x128xf32, #tpu.memory_space<vmem>>, %arg4: memref<1x128xf32, #tpu.memory_space<vmem>>, %arg5: memref<128x128xf32, #tpu.memory_space<vmem>>, %arg6: memref<1x128xf32, #tpu.memory_space<vmem>>, %arg7: memref<2x128xf32, #tpu.memory_space<vmem>>, %arg8: memref<2x128xf32, #tpu.memory_space<vmem>>, %arg9: memref<2x128xf32, #tpu.memory_space<vmem>>) attributes {dimension_semantics = [#tpu.dimension_semantics<parallel>, #tpu.dimension_semantics<arbitrary>], iteration_bounds = array<i64: 1, 1>, scalar_prefetch = 0 : i64, scratch_operands = 1 : i64, tpu.core_type = #tpu.core_type<tc>, window_params = [{transform_indices = @transform_0, window_bounds = array<i64: 2, 1024>}, {transform_indices = @transform_1, window_bounds = array<i64: 1024, 128>}, {pipeline_mode = #tpu.pipeline_mode<synchronous>, transform_indices = @transform_2, window_bounds = array<i64: 1, 128>}, {pipeline_mode = #tpu.pipeline_mode<synchronous>, transform_indices = @transform_3, window_bounds = array<i64: 128, 128>}, {pipeline_mode = #tpu.pipeline_mode<synchronous>, transform_indices = @transform_4, window_bounds = array<i64: 1, 128>}, {transform_indices = @transform_5, window_bounds = array<i64: 2, 128>}, {transform_indices = @transform_6, window_bounds = array<i64: 2, 128>}]} {
    %c0_i32 = arith.constant 0 : i32
    %0 = arith.cmpi eq, %arg1, %c0_i32 : i32
    %1 = arith.extui %0 : i1 to i32
    %c0_i32_0 = arith.constant 0 : i32
    %2 = arith.cmpi ne, %1, %c0_i32_0 : i32
    scf.if %2 {
      %cst_10 = arith.constant 0.000000e+00 : f32
      %12 = vector.broadcast %cst_10 : f32 to vector<2x128xf32>
      %c0_11 = arith.constant 0 : index
      %c0_12 = arith.constant 0 : index
      %13 = vector.load %arg9[%c0_11, %c0_12] : memref<2x128xf32, #tpu.memory_space<vmem>>, vector<2x128xf32>
      tpu.vector_store %arg9[%c0_11, %c0_12], %12 {strides = array<i32>} : memref<2x128xf32, #tpu.memory_space<vmem>>, vector<2x128xf32>,
    } else {
    }
    %c0 = arith.constant 0 : index
    %c0_1 = arith.constant 0 : index
    %3 = vector.load %arg2[%c0, %c0_1] : memref<2x1024xf32, #tpu.memory_space<vmem>>, vector<2x1024xf32>
    %c0_2 = arith.constant 0 : index
    %c0_3 = arith.constant 0 : index
    %4 = vector.load %arg9[%c0_2, %c0_3] : memref<2x128xf32, #tpu.memory_space<vmem>>, vector<2x128xf32>
    %c0_4 = arith.constant 0 : index
    %c0_5 = arith.constant 0 : index
    %5 = vector.load %arg3[%c0_4, %c0_5] : memref<1024x128xf32, #tpu.memory_space<vmem>>, vector<1024x128xf32>
    %cst = arith.constant dense<0.000000e+00> : vector<2x128xf32>
    %6 = tpu.matmul %3, %5, %cst {dimension_numbers = #tpu.dot_dimension_numbers<[1], [0], [0], [1], [0, 0, 1, 1], [], []>} : vector<2x1024xf32>, vector<1024x128xf32>, vector<2x128xf32> -> vector<2x128xf32>
    %7 = arith.addf %4, %6 : vector<2x128xf32>
    %c0_6 = arith.constant 0 : index
    %c0_7 = arith.constant 0 : index
    %8 = vector.load %arg9[%c0_6, %c0_7] : memref<2x128xf32, #tpu.memory_space<vmem>>, vector<2x128xf32>
    tpu.vector_store %arg9[%c0_6, %c0_7], %7 {strides = array<i32>} : memref<2x128xf32, #tpu.memory_space<vmem>>, vector<2x128xf32>,
    %c0_i32_8 = arith.constant 0 : i32
    %9 = arith.cmpi eq, %arg1, %c0_i32_8 : i32
    %10 = arith.extui %9 : i1 to i32
    %c0_i32_9 = arith.constant 0 : i32
    %11 = arith.cmpi ne, %10, %c0_i32_9 : i32
    scf.if %11 {
      %c0_10 = arith.constant 0 : index
      %c0_11 = arith.constant 0 : index
      %12 = vector.load %arg9[%c0_10, %c0_11] : memref<2x128xf32, #tpu.memory_space<vmem>>, vector<2x128xf32>
      %c0_12 = arith.constant 0 : index
      %c0_13 = arith.constant 0 : index
      %13 = vector.load %arg4[%c0_12, %c0_13] : memref<1x128xf32, #tpu.memory_space<vmem>>, vector<1x128xf32>
      %14 = vector.broadcast %13 : vector<1x128xf32> to vector<2x128xf32>
      %15 = arith.addf %12, %14 : vector<2x128xf32>
      %cst_14 = arith.constant 0.000000e+00 : f32
      %16 = vector.broadcast %cst_14 : f32 to vector<2x128xf32>
      %17 = arith.maximumf %15, %16 : vector<2x128xf32>
      %c0_15 = arith.constant 0 : index
      %c0_16 = arith.constant 0 : index
      %18 = vector.load %arg8[%c0_15, %c0_16] : memref<2x128xf32, #tpu.memory_space<vmem>>, vector<2x128xf32>
      tpu.vector_store %arg8[%c0_15, %c0_16], %17 {strides = array<i32>} : memref<2x128xf32, #tpu.memory_space<vmem>>, vector<2x128xf32>,
      %c0_17 = arith.constant 0 : index
      %c0_18 = arith.constant 0 : index
      %19 = vector.load %arg5[%c0_17, %c0_18] : memref<128x128xf32, #tpu.memory_space<vmem>>, vector<128x128xf32>
      %cst_19 = arith.constant dense<0.000000e+00> : vector<2x128xf32>
      %20 = tpu.matmul %17, %19, %cst_19 {dimension_numbers = #tpu.dot_dimension_numbers<[1], [0], [0], [1], [0, 0, 1, 1], [], []>} : vector<2x128xf32>, vector<128x128xf32>, vector<2x128xf32> -> vector<2x128xf32>
      %c0_20 = arith.constant 0 : index
      %c0_21 = arith.constant 0 : index
      %21 = vector.load %arg6[%c0_20, %c0_21] : memref<1x128xf32, #tpu.memory_space<vmem>>, vector<1x128xf32>
      %22 = vector.broadcast %21 : vector<1x128xf32> to vector<2x128xf32>
      %23 = arith.addf %20, %22 : vector<2x128xf32>
      %c0_22 = arith.constant 0 : index
      %c0_23 = arith.constant 0 : index
      %24 = vector.load %arg7[%c0_22, %c0_23] : memref<2x128xf32, #tpu.memory_space<vmem>>, vector<2x128xf32>
      tpu.vector_store %arg7[%c0_22, %c0_23], %23 {strides = array<i32>} : memref<2x128xf32, #tpu.memory_space<vmem>>, vector<2x128xf32>,
    } else {
    }
    return
  }
  func.func @transform_0(%arg0: i32, %arg1: i32) -> (i32, i32) {
    %c0_i32 = arith.constant 0 : i32
    return %arg0, %arg1 : i32, i32
  }
  func.func @transform_1(%arg0: i32, %arg1: i32) -> (i32, i32) {
    %c0_i32 = arith.constant 0 : i32
    %c0_i32_0 = arith.constant 0 : i32
    return %arg1, %c0_i32 : i32, i32
  }
  func.func @transform_2(%arg0: i32, %arg1: i32) -> (i32, i32) {
    %c0_i32 = arith.constant 0 : i32
    %c0_i32_0 = arith.constant 0 : i32
    %c0_i32_1 = arith.constant 0 : i32
    return %c0_i32, %c0_i32_0 : i32, i32
  }
  func.func @transform_3(%arg0: i32, %arg1: i32) -> (i32, i32) {
    %c0_i32 = arith.constant 0 : i32
    %c0_i32_0 = arith.constant 0 : i32
    %c0_i32_1 = arith.constant 0 : i32
    return %c0_i32, %c0_i32_0 : i32, i32
  }
  func.func @transform_4(%arg0: i32, %arg1: i32) -> (i32, i32) {
    %c0_i32 = arith.constant 0 : i32
    %c0_i32_0 = arith.constant 0 : i32
    %c0_i32_1 = arith.constant 0 : i32
    return %c0_i32, %c0_i32_0 : i32, i32
  }
  func.func @transform_5(%arg0: i32, %arg1: i32) -> (i32, i32) {
    %c0_i32 = arith.constant 0 : i32
    %c0_i32_0 = arith.constant 0 : i32
    return %arg0, %c0_i32 : i32, i32
  }
  func.func @transform_6(%arg0: i32, %arg1: i32) -> (i32, i32) {
    %c0_i32 = arith.constant 0 : i32
    %c0_i32_0 = arith.constant 0 : i32
    return %arg0, %c0_i32 : i32, i32
  }
}

</mosaic_0001>

<llo_original>
// kernel: classifier_forward.1
$region0: #{classifier_forward.1}
  #allocation0 [shape = 'u32[]', space=smem, size = 0x4, offset = 0x4, fixed_abs, tag = 'smem constant byte address 0x4 - core index']
  #allocation1 [shape = 'u32[72,128]{1,0:T(1,128)}', space=vmem, size = 0x9000, scoped, tag = 'internal scratch']
  #allocation2 [shape = 'f32[2,128]{1,0:T(2,128)}', space=vmem, size = 0x400, scoped, tag = 'scratch operand']
  %s0 = inlined_call_operand.vmem [shape: f32[2,1024], index: 0, kind: input, shape index: {}]
  %s1 = inlined_call_operand.hbm [shape: f32[1024,128], index: 1, kind: input, shape index: {}]
  %s2 = inlined_call_operand.vmem [shape: f32[1,128], index: 2, kind: input, shape index: {}]
  %s3 = inlined_call_operand.vmem [shape: f32[128,128], index: 3, kind: input, shape index: {}]
  %s4 = inlined_call_operand.vmem [shape: f32[1,128], index: 4, kind: input, shape index: {}]
  %s5 = inlined_call_operand.hbm [shape: f32[2,128], index: 5, kind: output, shape index: {0}]
  %s6 = inlined_call_operand.hbm [shape: f32[2,128], index: 6, kind: output, shape index: {1}]
  %7 = xla_tuple %s5, %s6
  %s8 = sld [smem:[#allocation0]]
  $region50: #{classifier_forward.1} parent=0
    _
  %s10 = ssub.s32 1, %s8
  %s11 = scalar_select 0, %s10, %s8
  $region1: #{classifier_forward.1} parent=0
    #allocation3 [shape = 'u8[524288]{0}', space=vmem, size = 0x80000, scoped, tag = 'input window, operand 1, single buffered']
    #allocation4 [shape = 's32[1]{0}', space=sflag, size = 0x4, scoped, tag = 'scoped memory for classifier_forward.1']
    #allocation5 [shape = 's32[1]{0}', space=sflag, size = 0x4, scoped, tag = 'scoped memory for classifier_forward.1']
    #allocation6 [shape = 'u8[1024]{0}', space=vmem, size = 0x400, scoped, tag = 'output window, operand 0, single buffered']
    #allocation7 [shape = 'u8[1024]{0}', space=vmem, size = 0x400, scoped, tag = 'output window, operand 1, single buffered']
    #allocation8 [shape = 's32[1]{0}', space=sflag, size = 0x4, scoped, tag = 'scoped memory for classifier_forward.1']
    %12 = vsyncpa [#allocation4], 0
    %13 = vsyncpa [#allocation5], 0
    %14 = vsyncpa [#allocation8], 0
    // Predicated region
    $region2: #{classifier_forward.1} parent=1 // pred_check
      _
    $region3: #{classifier_forward.1} parent=1 // pred_check_branch
      %16 = sbr.rel (0) target = $region5
    $region4: #{classifier_forward.1} parent=1 // pred_region
      _
    $region5: #{classifier_forward.1} parent=1 // pred_fallthru
      _
    // Predicated region
    $region6: #{classifier_forward.1} parent=1 // pred_check
      _
    $region7: #{classifier_forward.1} parent=1 // pred_check_branch
      %18 = sbr.rel (0) target = $region9
    $region8: #{classifier_forward.1} parent=1 // pred_region
      %20 = vsyncadd [#allocation4], 0
      %s21 = sshll.u32 %s1, 4
      %s22 = int_to_ptr.hbm [resolvable:$true] %s21
      %s23 = sshll.u32 [#allocation3], 4
      %s24 = int_to_ptr.vmem [resolvable:$true] %s23
      %29 = dma.hbm_to_vmem [thread:$0]  %s22, 16384, %s24, [#allocation4], 128, 128, 8
    $region9: #{classifier_forward.1} parent=1 // pred_fallthru
      _
    // Predicated region
    $region10: #{classifier_forward.1} parent=1 // pred_check
      _
    $region11: #{classifier_forward.1} parent=1 // pred_check_branch
      %31 = sbr.rel (0) target = $region13
    $region12: #{classifier_forward.1} parent=1 // pred_region
      _
    $region13: #{classifier_forward.1} parent=1 // pred_fallthru
      _
    // Predicated region
    $region14: #{classifier_forward.1} parent=1 // pred_check
      _
    $region15: #{classifier_forward.1} parent=1 // pred_check_branch
      %33 = sbr.rel (0) target = $region17
    $region16: #{classifier_forward.1} parent=1 // pred_region
      _
    $region17: #{classifier_forward.1} parent=1 // pred_fallthru
      _
    // Predicated region
    $region18: #{classifier_forward.1} parent=1 // pred_check
      _
    $region19: #{classifier_forward.1} parent=1 // pred_check_branch
      %35 = sbr.rel (0) target = $region21
    $region20: #{classifier_forward.1} parent=1 // pred_region
      _
    $region21: #{classifier_forward.1} parent=1 // pred_fallthru
      _
    // Predicated region
    $region22: #{classifier_forward.1} parent=1 // pred_check
      _
    $region23: #{classifier_forward.1} parent=1 // pred_check_branch
      %37 = sbr.rel (0) target = $region25
    $region24: #{classifier_forward.1} parent=1 // pred_region
      %39 = dma.done [#allocation4], 16384
    $region25: #{classifier_forward.1} parent=1 // pred_fallthru
      _
    %p40 = scmp.eq.s32.totalorder 0, 0
    // Predicated region
    $region26: #{classifier_forward.1} parent=1 // pred_check
      %p41 = pneg %p40
    $region27: #{classifier_forward.1} parent=1 // pred_check_branch
      %43 = sbr.rel (%p41) target = $region29
    $region28: #{classifier_forward.1} parent=1 // pred_region
      %44 = vst [vmem:[#allocation2] sm:$0x3] 0.0
    $region29: #{classifier_forward.1} parent=1 // pred_fallthru
      _
    %v45 = vld [vmem:[%s0] sm:$0xff]
    %v46 = vld [vmem:[%s0 + $0x8] sm:$0xff]
    %v47 = vld [vmem:[#allocation2] sm:$0x3]
    %v48 = vld [vmem:[#allocation3] sm:$0xff]
    %v49 = vld [vmem:[#allocation3 + $0x8] sm:$0xff]
    %v50 = vld [vmem:[#allocation3 + $0x10] sm:$0xff]
    %v51 = vld [vmem:[#allocation3 + $0x18] sm:$0xff]
    %v52 = vld [vmem:[#allocation3 + $0x20] sm:$0xff]
    %v53 = vld [vmem:[#allocation3 + $0x28] sm:$0xff]
    %v54 = vld [vmem:[#allocation3 + $0x30] sm:$0xff]
    %v55 = vld [vmem:[#allocation3 + $0x38] sm:$0xff]
    %v56 = vld [vmem:[#allocation3 + $0x40] sm:$0xff]
    %v57 = vld [vmem:[#allocation3 + $0x48] sm:$0xff]
    %v58 = vld [vmem:[#allocation3 + $0x50] sm:$0xff]
    %v59 = vld [vmem:[#allocation3 + $0x58] sm:$0xff]
    %v60 = vld [vmem:[#allocation3 + $0x60] sm:$0xff]
    %v61 = vld [vmem:[#allocation3 + $0x68] sm:$0xff]
    %v62 = vld [vmem:[#allocation3 + $0x70] sm:$0xff]
    %v63 = vld [vmem:[#allocation3 + $0x78] sm:$0xff]
    %v64 = vld [vmem:[#allocation3 + $0x80] sm:$0xff]
    %v65 = vld [vmem:[#allocation3 + $0x88] sm:$0xff]
    %v66 = vld [vmem:[#allocation3 + $0x90] sm:$0xff]
    %v67 = vld [vmem:[#allocation3 + $0x98] sm:$0xff]
    %v68 = vld [vmem:[#allocation3 + $0xa0] sm:$0xff]
    %v69 = vld [vmem:[#allocation3 + $0xa8] sm:$0xff]
    %v70 = vld [vmem:[#allocation3 + $0xb0] sm:$0xff]
    %v71 = vld [vmem:[#allocation3 + $0xb8] sm:$0xff]
    %v72 = vld [vmem:[#allocation3 + $0xc0] sm:$0xff]
    %v73 = vld [vmem:[#allocation3 + $0xc8] sm:$0xff]
    %v74 = vld [vmem:[#allocation3 + $0xd0] sm:$0xff]
    %v75 = vld [vmem:[#allocation3 + $0xd8] sm:$0xff]
    %v76 = vld [vmem:[#allocation3 + $0xe0] sm:$0xff]
    %v77 = vld [vmem:[#allocation3 + $0xe8] sm:$0xff]
    %v78 = vld [vmem:[#allocation3 + $0xf0] sm:$0xff]
    %v79 = vld [vmem:[#allocation3 + $0xf8] sm:$0xff]
    %v80 = vld [vmem:[#allocation3 + $0x100] sm:$0xff]
    %v81 = vld [vmem:[#allocation3 + $0x108] sm:$0xff]
    %v82 = vld [vmem:[#allocation3 + $0x110] sm:$0xff]
    %v83 = vld [vmem:[#allocation3 + $0x118] sm:$0xff]
    %v84 = vld [vmem:[#allocation3 + $0x120] sm:$0xff]
    %v85 = vld [vmem:[#allocation3 + $0x128] sm:$0xff]
    %v86 = vld [vmem:[#allocation3 + $0x130] sm:$0xff]
    %v87 = vld [vmem:[#allocation3 + $0x138] sm:$0xff]
    %v88 = vld [vmem:[#allocation3 + $0x140] sm:$0xff]
    %v89 = vld [vmem:[#allocation3 + $0x148] sm:$0xff]
    %v90 = vld [vmem:[#allocation3 + $0x150] sm:$0xff]
    %v91 = vld [vmem:[#allocation3 + $0x158] sm:$0xff]
    %v92 = vld [vmem:[#allocation3 + $0x160] sm:$0xff]
    %v93 = vld [vmem:[#allocation3 + $0x168] sm:$0xff]
    %v94 = vld [vmem:[#allocation3 + $0x170] sm:$0xff]
    %v95 = vld [vmem:[#allocation3 + $0x178] sm:$0xff]
    %v96 = vld [vmem:[#allocation3 + $0x180] sm:$0xff]
    %v97 = vld [vmem:[#allocation3 + $0x188] sm:$0xff]
    %v98 = vld [vmem:[#allocation3 + $0x190] sm:$0xff]
    %v99 = vld [vmem:[#allocation3 + $0x198] sm:$0xff]
    %v100 = vld [vmem:[#allocation3 + $0x1a0] sm:$0xff]
    %v101 = vld [vmem:[#allocation3 + $0x1a8] sm:$0xff]
    %v102 = vld [vmem:[#allocation3 + $0x1b0] sm:$0xff]
    %v103 = vld [vmem:[#allocation3 + $0x1b8] sm:$0xff]
    %v104 = vld [vmem:[#allocation3 + $0x1c0] sm:$0xff]
    %v105 = vld [vmem:[#allocation3 + $0x1c8] sm:$0xff]
    %v106 = vld [vmem:[#allocation3 + $0x1d0] sm:$0xff]
    %v107 = vld [vmem:[#allocation3 + $0x1d8] sm:$0xff]
    %v108 = vld [vmem:[#allocation3 + $0x1e0] sm:$0xff]
    %v109 = vld [vmem:[#allocation3 + $0x1e8] sm:$0xff]
    %v110 = vld [vmem:[#allocation3 + $0x1f0] sm:$0xff]
    %v111 = vld [vmem:[#allocation3 + $0x1f8] sm:$0xff]
    %v112 = vld [vmem:[#allocation3 + $0x200] sm:$0xff]
    %v113 = vld [vmem:[#allocation3 + $0x208] sm:$0xff]
    %v114 = vld [vmem:[#allocation3 + $0x210] sm:$0xff]
    %v115 = vld [vmem:[#allocation3 + $0x218] sm:$0xff]
    %v116 = vld [vmem:[#allocation3 + $0x220] sm:$0xff]
    %v117 = vld [vmem:[#allocation3 + $0x228] sm:$0xff]
    %v118 = vld [vmem:[#allocation3 + $0x230] sm:$0xff]
    %v119 = vld [vmem:[#allocation3 + $0x238] sm:$0xff]
    %v120 = vld [vmem:[#allocation3 + $0x240] sm:$0xff]
    %v121 = vld [vmem:[#allocation3 + $0x248] sm:$0xff]
    %v122 = vld [vmem:[#allocation3 + $0x250] sm:$0xff]
    %v123 = vld [vmem:[#allocation3 + $0x258] sm:$0xff]
    %v124 = vld [vmem:[#allocation3 + $0x260] sm:$0xff]
    %v125 = vld [vmem:[#allocation3 + $0x268] sm:$0xff]
    %v126 = vld [vmem:[#allocation3 + $0x270] sm:$0xff]
    %v127 = vld [vmem:[#allocation3 + $0x278] sm:$0xff]
    %v128 = vld [vmem:[#allocation3 + $0x280] sm:$0xff]
    %v129 = vld [vmem:[#allocation3 + $0x288] sm:$0xff]
    %v130 = vld [vmem:[#allocation3 + $0x290] sm:$0xff]
    %v131 = vld [vmem:[#allocation3 + $0x298] sm:$0xff]
    %v132 = vld [vmem:[#allocation3 + $0x2a0] sm:$0xff]
    %v133 = vld [vmem:[#allocation3 + $0x2a8] sm:$0xff]
    %v134 = vld [vmem:[#allocation3 + $0x2b0] sm:$0xff]
    %v135 = vld [vmem:[#allocation3 + $0x2b8] sm:$0xff]
    %v136 = vld [vmem:[#allocation3 + $0x2c0] sm:$0xff]
    %v137 = vld [vmem:[#allocation3 + $0x2c8] sm:$0xff]
    %v138 = vld [vmem:[#allocation3 + $0x2d0] sm:$0xff]
    %v139 = vld [vmem:[#allocation3 + $0x2d8] sm:$0xff]
    %v140 = vld [vmem:[#allocation3 + $0x2e0] sm:$0xff]
    %v141 = vld [vmem:[#allocation3 + $0x2e8] sm:$0xff]
    %v142 = vld [vmem:[#allocation3 + $0x2f0] sm:$0xff]
    %v143 = vld [vmem:[#allocation3 + $0x2f8] sm:$0xff]
    %v144 = vld [vmem:[#allocation3 + $0x300] sm:$0xff]
    %v145 = vld [vmem:[#allocation3 + $0x308] sm:$0xff]
    %v146 = vld [vmem:[#allocation3 + $0x310] sm:$0xff]
    %v147 = vld [vmem:[#allocation3 + $0x318] sm:$0xff]
    %v148 = vld [vmem:[#allocation3 + $0x320] sm:$0xff]
    %v149 = vld [vmem:[#allocation3 + $0x328] sm:$0xff]
    %v150 = vld [vmem:[#allocation3 + $0x330] sm:$0xff]
    %v151 = vld [vmem:[#allocation3 + $0x338] sm:$0xff]
    %v152 = vld [vmem:[#allocation3 + $0x340] sm:$0xff]
    %v153 = vld [vmem:[#allocation3 + $0x348] sm:$0xff]
    %v154 = vld [vmem:[#allocation3 + $0x350] sm:$0xff]
    %v155 = vld [vmem:[#allocation3 + $0x358] sm:$0xff]
    %v156 = vld [vmem:[#allocation3 + $0x360] sm:$0xff]
    %v157 = vld [vmem:[#allocation3 + $0x368] sm:$0xff]
    %v158 = vld [vmem:[#allocation3 + $0x370] sm:$0xff]
    %v159 = vld [vmem:[#allocation3 + $0x378] sm:$0xff]
    %v160 = vld [vmem:[#allocation3 + $0x380] sm:$0xff]
    %v161 = vld [vmem:[#allocation3 + $0x388] sm:$0xff]
    %v162 = vld [vmem:[#allocation3 + $0x390] sm:$0xff]
    %v163 = vld [vmem:[#allocation3 + $0x398] sm:$0xff]
    %v164 = vld [vmem:[#allocation3 + $0x3a0] sm:$0xff]
    %v165 = vld [vmem:[#allocation3 + $0x3a8] sm:$0xff]
    %v166 = vld [vmem:[#allocation3 + $0x3b0] sm:$0xff]
    %v167 = vld [vmem:[#allocation3 + $0x3b8] sm:$0xff]
    %v168 = vld [vmem:[#allocation3 + $0x3c0] sm:$0xff]
    %v169 = vld [vmem:[#allocation3 + $0x3c8] sm:$0xff]
    %v170 = vld [vmem:[#allocation3 + $0x3d0] sm:$0xff]
    %v171 = vld [vmem:[#allocation3 + $0x3d8] sm:$0xff]
    %v172 = vld [vmem:[#allocation3 + $0x3e0] sm:$0xff]
    %v173 = vld [vmem:[#allocation3 + $0x3e8] sm:$0xff]
    %v174 = vld [vmem:[#allocation3 + $0x3f0] sm:$0xff]
    %v175 = vld [vmem:[#allocation3 + $0x3f8] sm:$0xff]
    %178 = vst [vmem:[#allocation1] ss:$4 sm:$0xff] %v45
    %s179 = scalar_lea.vmem [#allocation1], 32
    %180 = vst [vmem:[%s179] ss:$4 sm:$0xff] %v46
    %v181 = vld.sshfl [vmem:[#allocation1] sm:$0xff pattern:$0x73625140]
    %v182 = vld.sshfl [vmem:[#allocation1 + $0x8] sm:$0xff pattern:$0x73625140]
    %v183 = vld.sshfl [vmem:[#allocation1 + $0x10] sm:$0xff pattern:$0x73625140]
    %v184 = vld.sshfl [vmem:[#allocation1 + $0x18] sm:$0xff pattern:$0x73625140]
    %v185 = vld.sshfl [vmem:[#allocation1 + $0x20] sm:$0xff pattern:$0x73625140]
    %v186 = vld.sshfl [vmem:[#allocation1 + $0x28] sm:$0xff pattern:$0x73625140]
    %v187 = vld.sshfl [vmem:[#allocation1 + $0x30] sm:$0xff pattern:$0x73625140]
    %v188 = vld.sshfl [vmem:[#allocation1 + $0x38] sm:$0xff pattern:$0x73625140]
    %197 = vmatpush.msra.mxu0 %v63
    %198 = vmatpush.msra.mxu0 %v62
    %199 = vmatpush.msra.mxu0 %v61
    %200 = vmatpush.msra.mxu0 %v60
    %201 = vmatpush.msra.mxu0 %v59
    %202 = vmatpush.msra.mxu0 %v58
    %203 = vmatpush.msra.mxu0 %v57
    %204 = vmatpush.msra.mxu0 %v56
    %205 = vmatpush.msra.mxu0 %v55
    %206 = vmatpush.msra.mxu0 %v54
    %207 = vmatpush.msra.mxu0 %v53
    %208 = vmatpush.msra.mxu0 %v52
    %209 = vmatpush.msra.mxu0 %v51
    %210 = vmatpush.msra.mxu0 %v50
    %211 = vmatpush.msra.mxu0 %v49
    %212 = vmatpush.msra.mxu0 %v48
    %213 = vmatmul.f32.gmra.mxu0 %v181
    %v214 = vpop.f32.mrf.mxu0
    %v215 = vadd.f32 0.0, %v214
    %216 = vdwg.mxu0
    %217 = vmatpush.msra.mxu0 %v79
    %218 = vmatpush.msra.mxu0 %v78
    %219 = vmatpush.msra.mxu0 %v77
    %220 = vmatpush.msra.mxu0 %v76
    %221 = vmatpush.msra.mxu0 %v75
    %222 = vmatpush.msra.mxu0 %v74
    %223 = vmatpush.msra.mxu0 %v73
    %224 = vmatpush.msra.mxu0 %v72
    %225 = vmatpush.msra.mxu0 %v71
    %226 = vmatpush.msra.mxu0 %v70
    %227 = vmatpush.msra.mxu0 %v69
    %228 = vmatpush.msra.mxu0 %v68
    %229 = vmatpush.msra.mxu0 %v67
    %230 = vmatpush.msra.mxu0 %v66
    %231 = vmatpush.msra.mxu0 %v65
    %232 = vmatpush.msra.mxu0 %v64
    %233 = vmatmul.f32.gmra.mxu0 %v182
    %v234 = vpop.f32.mrf.mxu0
    %v235 = vadd.f32 %v215, %v234
    %236 = vdwg.mxu0
    %237 = vmatpush.msra.mxu0 %v95
    %238 = vmatpush.msra.mxu0 %v94
    %239 = vmatpush.msra.mxu0 %v93
    %240 = vmatpush.msra.mxu0 %v92
    %241 = vmatpush.msra.mxu0 %v91
    %242 = vmatpush.msra.mxu0 %v90
    %243 = vmatpush.msra.mxu0 %v89
    %244 = vmatpush.msra.mxu0 %v88
    %245 = vmatpush.msra.mxu0 %v87
    %246 = vmatpush.msra.mxu0 %v86
    %247 = vmatpush.msra.mxu0 %v85
    %248 = vmatpush.msra.mxu0 %v84
    %249 = vmatpush.msra.mxu0 %v83
    %250 = vmatpush.msra.mxu0 %v82
    %251 = vmatpush.msra.mxu0 %v81
    %252 = vmatpush.msra.mxu0 %v80
    %253 = vmatmul.f32.gmra.mxu0 %v183
    %v254 = vpop.f32.mrf.mxu0
    %v255 = vadd.f32 %v235, %v254
    %256 = vdwg.mxu0
    %257 = vmatpush.msra.mxu0 %v111
    %258 = vmatpush.msra.mxu0 %v110
    %259 = vmatpush.msra.mxu0 %v109
    %260 = vmatpush.msra.mxu0 %v108
    %261 = vmatpush.msra.mxu0 %v107
    %262 = vmatpush.msra.mxu0 %v106
    %263 = vmatpush.msra.mxu0 %v105
    %264 = vmatpush.msra.mxu0 %v104
    %265 = vmatpush.msra.mxu0 %v103
    %266 = vmatpush.msra.mxu0 %v102
    %267 = vmatpush.msra.mxu0 %v101
    %268 = vmatpush.msra.mxu0 %v100
    %269 = vmatpush.msra.mxu0 %v99
    %270 = vmatpush.msra.mxu0 %v98
    %271 = vmatpush.msra.mxu0 %v97
    %272 = vmatpush.msra.mxu0 %v96
    %273 = vmatmul.f32.gmra.mxu0 %v184
    %v274 = vpop.f32.mrf.mxu0
    %v275 = vadd.f32 %v255, %v274
    %276 = vdwg.mxu0
    %277 = vmatpush.msra.mxu0 %v127
    %278 = vmatpush.msra.mxu0 %v126
    %279 = vmatpush.msra.mxu0 %v125
    %280 = vmatpush.msra.mxu0 %v124
    %281 = vmatpush.msra.mxu0 %v123
    %282 = vmatpush.msra.mxu0 %v122
    %283 = vmatpush.msra.mxu0 %v121
    %284 = vmatpush.msra.mxu0 %v120
    %285 = vmatpush.msra.mxu0 %v119
    %286 = vmatpush.msra.mxu0 %v118
    %287 = vmatpush.msra.mxu0 %v117
    %288 = vmatpush.msra.mxu0 %v116
    %289 = vmatpush.msra.mxu0 %v115
    %290 = vmatpush.msra.mxu0 %v114
    %291 = vmatpush.msra.mxu0 %v113
    %292 = vmatpush.msra.mxu0 %v112
    %293 = vmatmul.f32.gmra.mxu0 %v185
    %v294 = vpop.f32.mrf.mxu0
    %v295 = vadd.f32 %v275, %v294
    %296 = vdwg.mxu0
    %297 = vmatpush.msra.mxu0 %v143
    %298 = vmatpush.msra.mxu0 %v142
    %299 = vmatpush.msra.mxu0 %v141
    %300 = vmatpush.msra.mxu0 %v140
    %301 = vmatpush.msra.mxu0 %v139
    %302 = vmatpush.msra.mxu0 %v138
    %303 = vmatpush.msra.mxu0 %v137
    %304 = vmatpush.msra.mxu0 %v136
    %305 = vmatpush.msra.mxu0 %v135
    %306 = vmatpush.msra.mxu0 %v134
    %307 = vmatpush.msra.mxu0 %v133
    %308 = vmatpush.msra.mxu0 %v132
    %309 = vmatpush.msra.mxu0 %v131
    %310 = vmatpush.msra.mxu0 %v130
    %311 = vmatpush.msra.mxu0 %v129
    %312 = vmatpush.msra.mxu0 %v128
    %313 = vmatmul.f32.gmra.mxu0 %v186
    %v314 = vpop.f32.mrf.mxu0
    %v315 = vadd.f32 %v295, %v314
    %316 = vdwg.mxu0
    %317 = vmatpush.msra.mxu0 %v159
    %318 = vmatpush.msra.mxu0 %v158
    %319 = vmatpush.msra.mxu0 %v157
    %320 = vmatpush.msra.mxu0 %v156
    %321 = vmatpush.msra.mxu0 %v155
    %322 = vmatpush.msra.mxu0 %v154
    %323 = vmatpush.msra.mxu0 %v153
    %324 = vmatpush.msra.mxu0 %v152
    %325 = vmatpush.msra.mxu0 %v151
    %326 = vmatpush.msra.mxu0 %v150
    %327 = vmatpush.msra.mxu0 %v149
    %328 = vmatpush.msra.mxu0 %v148
    %329 = vmatpush.msra.mxu0 %v147
    %330 = vmatpush.msra.mxu0 %v146
    %331 = vmatpush.msra.mxu0 %v145
    %332 = vmatpush.msra.mxu0 %v144
    %333 = vmatmul.f32.gmra.mxu0 %v187
    %v334 = vpop.f32.mrf.mxu0
    %v335 = vadd.f32 %v315, %v334
    %336 = vdwg.mxu0
    %337 = vmatpush.msra.mxu0 %v175
    %338 = vmatpush.msra.mxu0 %v174
    %339 = vmatpush.msra.mxu0 %v173
    %340 = vmatpush.msra.mxu0 %v172
    %341 = vmatpush.msra.mxu0 %v171
    %342 = vmatpush.msra.mxu0 %v170
    %343 = vmatpush.msra.mxu0 %v169
    %344 = vmatpush.msra.mxu0 %v168
    %345 = vmatpush.msra.mxu0 %v167
    %346 = vmatpush.msra.mxu0 %v166
    %347 = vmatpush.msra.mxu0 %v165
    %348 = vmatpush.msra.mxu0 %v164
    %349 = vmatpush.msra.mxu0 %v163
    %350 = vmatpush.msra.mxu0 %v162
    %351 = vmatpush.msra.mxu0 %v161
    %352 = vmatpush.msra.mxu0 %v160
    %353 = vmatmul.f32.gmra.mxu0 %v188
    %v354 = vpop.f32.mrf.mxu0
    %v355 = vadd.f32 %v335, %v354
    %356 = vdwg.mxu0
    %v357 = vadd.f32 %v47, %v355
    %358 = vst [vmem:[#allocation2] sm:$0x3] %v357
    // Predicated region
    $region30: #{classifier_forward.1} parent=1 // pred_check
      %p359 = pneg %p40
    $region31: #{classifier_forward.1} parent=1 // pred_check_branch
      %361 = sbr.rel (%p359) target = $region33
    $region32: #{classifier_forward.1} parent=1 // pred_region
      %v362 = vld [vmem:[#allocation2] sm:$0x3]
      %v363 = vld [vmem:[%s2] sm:$0x1]
      %v365 = vperm.slane %v363, 0
      %v367 = vadd.f32 %v362, %v365
      %v368 = vmax.f32 %v367, 0.0
      %369 = vst [vmem:[#allocation7] sm:$0x3] %v368
      %v370 = vld [vmem:[%s3] sm:$0xff]
      %v371 = vld [vmem:[%s3 + $0x8] sm:$0xff]
      %v372 = vld [vmem:[%s3 + $0x10] sm:$0xff]
      %v373 = vld [vmem:[%s3 + $0x18] sm:$0xff]
      %v374 = vld [vmem:[%s3 + $0x20] sm:$0xff]
      %v375 = vld [vmem:[%s3 + $0x28] sm:$0xff]
      %v376 = vld [vmem:[%s3 + $0x30] sm:$0xff]
      %v377 = vld [vmem:[%s3 + $0x38] sm:$0xff]
      %v378 = vld [vmem:[%s3 + $0x40] sm:$0xff]
      %v379 = vld [vmem:[%s3 + $0x48] sm:$0xff]
      %v380 = vld [vmem:[%s3 + $0x50] sm:$0xff]
      %v381 = vld [vmem:[%s3 + $0x58] sm:$0xff]
      %v382 = vld [vmem:[%s3 + $0x60] sm:$0xff]
      %v383 = vld [vmem:[%s3 + $0x68] sm:$0xff]
      %v384 = vld [vmem:[%s3 + $0x70] sm:$0xff]
      %v385 = vld [vmem:[%s3 + $0x78] sm:$0xff]
      %v386 = vld [vmem:[%s4] sm:$0x1]
      %v388 = vperm.slane %v386, 0
      %390 = vmatpush.msra.mxu0 %v385
      %391 = vmatpush.msra.mxu0 %v384
      %392 = vmatpush.msra.mxu0 %v383
      %393 = vmatpush.msra.mxu0 %v382
      %394 = vmatpush.msra.mxu0 %v381
      %395 = vmatpush.msra.mxu0 %v380
      %396 = vmatpush.msra.mxu0 %v379
      %397 = vmatpush.msra.mxu0 %v378
      %398 = vmatpush.msra.mxu0 %v377
      %399 = vmatpush.msra.mxu0 %v376
      %400 = vmatpush.msra.mxu0 %v375
      %401 = vmatpush.msra.mxu0 %v374
      %402 = vmatpush.msra.mxu0 %v373
      %403 = vmatpush.msra.mxu0 %v372
      %404 = vmatpush.msra.mxu0 %v371
      %405 = vmatpush.msra.mxu0 %v370
      %406 = vmatmul.f32.gmra.mxu0 %v368
      %v407 = vpop.f32.mrf.mxu0
      %v408 = vadd.f32 %v388, %v407
      %409 = vdwg.mxu0
      %410 = vst [vmem:[#allocation6] sm:$0x3] %v408
    $region33: #{classifier_forward.1} parent=1 // pred_fallthru
      _
    // Predicated region
    $region34: #{classifier_forward.1} parent=1 // pred_check
      _
    $region35: #{classifier_forward.1} parent=1 // pred_check_branch
      %412 = sbr.rel (0) target = $region37
    $region36: #{classifier_forward.1} parent=1 // pred_region
      %414 = vsyncadd [#allocation5], 0
      %s416 = sshll.u32 [#allocation6], 4
      %s417 = int_to_ptr.vmem [resolvable:$true] %s416
      %s418 = sshll.u32 %s5, 4
      %s419 = int_to_ptr.hbm [resolvable:$true] %s418
      %421 = dma.vmem_to_hbm [thread:$0]  %s417, 32, %s419, [#allocation5]
    $region37: #{classifier_forward.1} parent=1 // pred_fallthru
      _
    // Predicated region
    $region38: #{classifier_forward.1} parent=1 // pred_check
      _
    $region39: #{classifier_forward.1} parent=1 // pred_check_branch
      %423 = sbr.rel (0) target = $region41
    $region40: #{classifier_forward.1} parent=1 // pred_region
      %425 = vsyncadd [#allocation8], 0
      %s427 = sshll.u32 [#allocation7], 4
      %s428 = int_to_ptr.vmem [resolvable:$true] %s427
      %s429 = sshll.u32 %s6, 4
      %s430 = int_to_ptr.hbm [resolvable:$true] %s429
      %432 = dma.vmem_to_hbm [thread:$0]  %s428, 32, %s430, [#allocation8]
    $region41: #{classifier_forward.1} parent=1 // pred_fallthru
      _
    // Predicated region
    $region42: #{classifier_forward.1} parent=1 // pred_check
      _
    $region43: #{classifier_forward.1} parent=1 // pred_check_branch
      %434 = sbr.rel (0) target = $region45
    $region44: #{classifier_forward.1} parent=1 // pred_region
      %436 = dma.done [#allocation5], 32
    $region45: #{classifier_forward.1} parent=1 // pred_fallthru
      _
    // Predicated region
    $region46: #{classifier_forward.1} parent=1 // pred_check
      _
    $region47: #{classifier_forward.1} parent=1 // pred_check_branch
      %438 = sbr.rel (0) target = $region49
    $region48: #{classifier_forward.1} parent=1 // pred_region
      %440 = dma.done [#allocation8], 32
    $region49: #{classifier_forward.1} parent=1 // pred_fallthru
      _
    %441 = vsyncpa [#allocation4], 1
    %442 = vsyncpa [#allocation5], 1
    %443 = vsyncpa [#allocation8], 1

</llo_original>
